<compile_context>
chip_gen: v7x
topology: tpu7x:2x2x1
jax: 0.10.0
libtpu: 0.0.40
codegen_flags: <defaults>
</compile_context>

<pallas_src>
import jax
import jax.numpy as jnp
from jax.experimental import pallas as pl
from jax.experimental.pallas import tpu as pltpu


def _gemm_kernel(w_ref, p_ref, o_ref):
    """One output-column tile of the transposed im2col GEMM (bias pre-folded).

    w_ref: [COUT, K_PAD]    bf16 (VMEM, resident across the grid)
    p_ref: [K_PAD, TILE_M]  bf16 (VMEM) im2col patch columns
    o_ref: [COUT, TILE_M]   f32  (VMEM) output columns (lane-dense)
    """
    o_ref[...] = jnp.dot(
        w_ref[...], p_ref[...], preferred_element_type=jnp.float32
    ).astype(o_ref.dtype)


def conv2d_3x3(x_nchw, w_oihw, bias, *, tile_m=512, compute_dtype=jnp.bfloat16):
    """PyTorch-equivalent Conv2d(3, 64, kernel_size=3) forward.

    x_nchw: [N, Cin, H, W], w_oihw: [Cout, Cin, 3, 3], bias: [Cout]
    returns: [N, Cout, H-2, W-2] in x's dtype (f32 accumulation on the MXU).
    """
    N, Cin, H, W = x_nchw.shape
    Cout, _, KH, KW = w_oihw.shape
    Ho, Wo = H - KH + 1, W - KW + 1
    M = N * Ho * Wo                       # output pixels (lane axis of the GEMM)
    K = Cin * KH * KW                     # 27 im2col taps (sublane axis)

    # K pad: 27 taps + 1 bias slot -> 32 (multiple of bf16 sublane packing).
    K_PAD = max(32, pl.cdiv(K + 1, 32) * 32)

    # Tile the M (lane) axis.  Clamp so the parallel grid has >= 2 steps when M
    # allows it (keeps both v7x TensorCores busy) and stays a multiple of 128.
    tile_m = max(128, (int(tile_m) // 128) * 128)
    tile_cap = max(128, pl.cdiv(pl.cdiv(M, 2), 128) * 128)
    tile_m = min(tile_m, tile_cap)
    M_PAD = pl.cdiv(M, tile_m) * tile_m

    # ---- im2col in the wrapper: one XLA op, already transposed to [K, M] -----
    # conv_general_dilated_patches orders the patch channels channel-major:
    # tap index = cin*KH*KW + kh*KW + kw, which matches a plain OIHW reshape of
    # the weights below.  Out spec "CNHW" puts K first -> no extra transpose.
    x_lp = x_nchw.astype(compute_dtype)
    patches = jax.lax.conv_general_dilated_patches(
        x_lp, filter_shape=(KH, KW), window_strides=(1, 1), padding="VALID",
        dimension_numbers=("NCHW", "OIHW", "CNHW"),
    ).reshape(K, M)                                          # [27, M] bf16
    patches = jnp.pad(patches, ((0, K_PAD - K), (0, M_PAD - M)))
    # Bias slot: constant 1 in tap row K.  (Padded-M columns therefore evaluate
    # to the bias, not zero — harmless, they are sliced off below.)
    patches = patches.at[K, :].set(jnp.asarray(1, compute_dtype))

    # Weights: OIHW reshape is already (cout, cin*kh*kw); append bias column and
    # zero padding up to K_PAD.  Shape [Cout, K_PAD] = [64, 32] — tiny, resident.
    w_flat = w_oihw.reshape(Cout, K).astype(compute_dtype)
    w_mat = jnp.concatenate(
        [w_flat,
         bias.astype(compute_dtype)[:, None],
         jnp.zeros((Cout, K_PAD - K - 1), compute_dtype)],
        axis=1)

    grid = (M_PAD // tile_m,)
    out_t = pl.pallas_call(
        _gemm_kernel,
        out_shape=jax.ShapeDtypeStruct((Cout, M_PAD), jnp.float32),
        grid_spec=pltpu.PrefetchScalarGridSpec(
            num_scalar_prefetch=0,
            grid=grid,
            in_specs=[
                pl.BlockSpec((Cout, K_PAD), lambda i: (0, 0)),   # resident weights
                pl.BlockSpec((K_PAD, tile_m), lambda i: (0, i)), # patch tile
            ],
            out_specs=pl.BlockSpec((Cout, tile_m), lambda i: (0, i)),
        ),
        compiler_params=pltpu.CompilerParams(
            dimension_semantics=("parallel",),
        ),
    )(w_mat, patches)

    # [Cout, M] -> [Cout, N, Ho, Wo] -> NCHW.
    out = out_t[:, :M].reshape(Cout, N, Ho, Wo)
    return jnp.transpose(out, (1, 0, 2, 3)).astype(x_nchw.dtype)


if __name__ == "__main__":
    key = jax.random.PRNGKey(0)
    k_x, k_w, k_b = jax.random.split(key, 3)

    # Small shapes consistent with the module: N=2, Cin=3, H=W=16, Cout=64.
    N, Cin, H, W = 2, 3, 16, 16
    Cout, KH, KW = 64, 3, 3

    x = jax.random.normal(k_x, (N, Cin, H, W), dtype=jnp.float32)

    # Deterministic PyTorch-style init: uniform(-1/sqrt(fan_in), +1/sqrt(fan_in)).
    fan_in = Cin * KH * KW
    bound = 1.0 / jnp.sqrt(jnp.float32(fan_in))
    w = jax.random.uniform(k_w, (Cout, Cin, KH, KW), jnp.float32, -bound, bound)
    b = jax.random.uniform(k_b, (Cout,), jnp.float32, -bound, bound)

    out = conv2d_3x3(x, w, b)
    jax.block_until_ready(out)

    # Cross-check against XLA's native f32 conv (same semantics as torch Conv2d).
    # Tolerance accounts for the bf16 operand cast (f32 MXU accumulation).
    ref = jax.lax.conv_general_dilated(
        x, w, window_strides=(1, 1), padding="VALID",
        dimension_numbers=("NCHW", "OIHW", "NCHW"),
    ) + b.reshape(1, Cout, 1, 1)
    assert out.shape == (N, Cout, H - 2, W - 2)
    assert jnp.allclose(out, ref, atol=5e-2, rtol=5e-2)

    print("KERNEL_OK")
</pallas_src>

<mosaic_0001>
module attributes {stable_mosaic.version = 11 : i64} {
  func.func @_gemm_kernel(%arg0: i32, %arg1: memref<64x32xbf16, #tpu.memory_space<vmem>>, %arg2: memref<32x256xbf16, #tpu.memory_space<vmem>>, %arg3: memref<64x256xf32, #tpu.memory_space<vmem>>) attributes {dimension_semantics = [#tpu.dimension_semantics<parallel>], iteration_bounds = array<i64: 2>, scalar_prefetch = 0 : i64, scratch_operands = 0 : i64, tpu.core_type = #tpu.core_type<tc>, window_params = [{pipeline_mode = #tpu.pipeline_mode<synchronous>, transform_indices = @transform_0, window_bounds = array<i64: 64, 32>}, {transform_indices = @transform_1, window_bounds = array<i64: 32, 256>}, {transform_indices = @transform_2, window_bounds = array<i64: 64, 256>}]} {
    %c0 = arith.constant 0 : index
    %c0_0 = arith.constant 0 : index
    %0 = vector.load %arg1[%c0, %c0_0] : memref<64x32xbf16, #tpu.memory_space<vmem>>, vector<64x32xbf16>
    %c0_1 = arith.constant 0 : index
    %c0_2 = arith.constant 0 : index
    %1 = vector.load %arg2[%c0_1, %c0_2] : memref<32x256xbf16, #tpu.memory_space<vmem>>, vector<32x256xbf16>
    %cst = arith.constant dense<0.000000e+00> : vector<64x256xf32>
    %2 = tpu.matmul %0, %1, %cst {dimension_numbers = #tpu.dot_dimension_numbers<[1], [0], [0], [1], [0, 0, 1, 1], [], []>} : vector<64x32xbf16>, vector<32x256xbf16>, vector<64x256xf32> -> vector<64x256xf32>
    %c0_3 = arith.constant 0 : index
    %c0_4 = arith.constant 0 : index
    %3 = vector.load %arg3[%c0_3, %c0_4] : memref<64x256xf32, #tpu.memory_space<vmem>>, vector<64x256xf32>
    tpu.vector_store %arg3[%c0_3, %c0_4], %2 {strides = array<i32>} : memref<64x256xf32, #tpu.memory_space<vmem>>, vector<64x256xf32>,
    return
  }
  func.func @transform_0(%arg0: i32) -> (i32, i32) {
    %c0_i32 = arith.constant 0 : i32
    %c0_i32_0 = arith.constant 0 : i32
    %c0_i32_1 = arith.constant 0 : i32
    return %c0_i32, %c0_i32_0 : i32, i32
  }
  func.func @transform_1(%arg0: i32) -> (i32, i32) {
    %c0_i32 = arith.constant 0 : i32
    %c0_i32_0 = arith.constant 0 : i32
    return %c0_i32, %arg0 : i32, i32
  }
  func.func @transform_2(%arg0: i32) -> (i32, i32) {
    %c0_i32 = arith.constant 0 : i32
    %c0_i32_0 = arith.constant 0 : i32
    return %c0_i32, %arg0 : i32, i32
  }
}

</mosaic_0001>

<llo_original>
// kernel: tpu_custom_call.1
$region0: #{tpu_custom_call.1}
  #allocation0 [shape = 'u32[]', space=smem, size = 0x4, offset = 0x4, fixed_abs, tag = 'smem constant byte address 0x4 - core index']
  #allocation1 [shape = 'u32[144,128]{1,0:T(1,128)}', space=vmem, size = 0x12000, scoped, tag = 'internal scratch']
  %s0 = inlined_call_operand.vmem [shape: bf16[64,32], index: 0, kind: input, shape index: {}]
  %s1 = inlined_call_operand.hbm [shape: bf16[32,512], index: 1, kind: input, shape index: {}]
  %s2 = inlined_call_operand.hbm [shape: f32[64,512], index: 2, kind: output, shape index: {}]
  %s3 = sld [smem:[#allocation0]]
  $region45: #{tpu_custom_call.1} parent=0
    _
  %s5 = ssub.s32 1, %s3
  %s6 = scalar_select 0, %s5, %s3
  $region1: #{tpu_custom_call.1} parent=0
    #allocation2 [shape = 'u8[32768]{0}', space=vmem, size = 0x8000, scoped, tag = 'input window, operand 1']
    #allocation3 [shape = 's32[2]{0}', space=sflag, size = 0x8, scoped, tag = 'scoped memory for tpu_custom_call.1']
    #allocation4 [shape = 's32[2]{0}', space=sflag, size = 0x8, scoped, tag = 'scoped memory for tpu_custom_call.1']
    #allocation5 [shape = 'u8[131072]{0}', space=vmem, size = 0x20000, scoped, tag = 'output window, operand 0']
    %7 = vsyncpa [#allocation3], 0
    %s8 = scalar_lea.sflag [#allocation3], 1
    %9 = vsyncpa %s8, 0
    %10 = vsyncpa [#allocation4], 0
    %s11 = scalar_lea.sflag [#allocation4], 1
    %12 = vsyncpa %s11, 0
    loop: start=0, step=1, limit=4
    $region2: #{tpu_custom_call.1} parent=1 // loop_pre_header
      _
    $region3: #{tpu_custom_call.1} parent=1 // loop_header
      %s14 = sphi 0, %s18
      %p15 = scmp.ge.s32.totalorder %s14, 4
      %s22 = sphi 0, %s22
      %s24 = sphi 0, %s22
      %s25 = sphi 0, %s24
      %s39 = sphi 0, %s25
      %s45 = sphi 0, %s47
      %s48 = sphi 0, %s45
      %s49 = sphi 0, %s48
      %s65 = sphi 0, %s49
      %s71 = sphi 0, %s73
      %s74 = sphi 0, %s71
      %s75 = sphi 0, %s74
      %s91 = sphi 0, %s75
    $region4: #{tpu_custom_call.1} parent=1 // loop_header_branch
      %17 = sbr.rel (%p15) target = $region8
    $region5: #{tpu_custom_call.1} parent=1 // loop_body
      %s19 = ssub.s32 %s14, 1
      %s20 = ssub.s32 %s14, 2
      %s21 = sadd.s32 %s14, 1
      %s23 = sadd.s32 %s22, 1
      %p26 = scmp.eq.s32.totalorder %s14, 1
      %p27 = scmp.ne.s32.totalorder %s22, %s24
      %p28 = scmp.eq.s32.totalorder %s14, 0
      %p29 = por %p27, %p28
      %p30 = scmp.ne.s32.totalorder %s22, %s24
      %p31 = scmp.eq.s32.totalorder %s19, 1
      %p32 = por %p30, %p31
      %p33 = scmp.ne.s32.totalorder %s24, %s25
      %p34 = scmp.eq.s32.totalorder %s19, 0
      %p35 = por %p33, %p34
      %p36 = scmp.ne.s32.totalorder %s24, %s25
      %p37 = scmp.eq.s32.totalorder %s20, 1
      %p38 = por %p36, %p37
      %p40 = scmp.ne.s32.totalorder %s25, %s39
      %p41 = scmp.eq.s32.totalorder %s20, 0
      %p42 = por %p40, %p41
      %s43 = ssub.s32 %s14, %s21
      %p44 = scmp.eq.s32.totalorder %s43, 0
      %s46 = sadd.s32 %s45, 1
      %s47 = scalar_select %p44, %s45, %s46
      %p50 = pneg %p44
      %p51 = scmp.eq.s32.totalorder %s14, 1
      %p52 = por %p50, %p51
      %p53 = scmp.ne.s32.totalorder %s45, %s48
      %p54 = scmp.eq.s32.totalorder %s14, 0
      %p55 = por %p53, %p54
      %p56 = scmp.ne.s32.totalorder %s45, %s48
      %p57 = scmp.eq.s32.totalorder %s19, 1
      %p58 = por %p56, %p57
      %p59 = scmp.ne.s32.totalorder %s48, %s49
      %p60 = scmp.eq.s32.totalorder %s19, 0
      %p61 = por %p59, %p60
      %p62 = scmp.ne.s32.totalorder %s48, %s49
      %p63 = scmp.eq.s32.totalorder %s20, 1
      %p64 = por %p62, %p63
      %p66 = scmp.ne.s32.totalorder %s49, %s65
      %p67 = scmp.eq.s32.totalorder %s20, 0
      %p68 = por %p66, %p67
      %s69 = ssub.s32 %s14, %s21
      %p70 = scmp.eq.s32.totalorder %s69, 0
      %s72 = sadd.s32 %s71, 1
      %s73 = scalar_select %p70, %s71, %s72
      %p76 = pneg %p70
      %p77 = scmp.eq.s32.totalorder %s14, 1
      %p78 = por %p76, %p77
      %p79 = scmp.ne.s32.totalorder %s71, %s74
      %p80 = scmp.eq.s32.totalorder %s14, 0
      %p81 = por %p79, %p80
      %p82 = scmp.ne.s32.totalorder %s71, %s74
      %p83 = scmp.eq.s32.totalorder %s19, 1
      %p84 = por %p82, %p83
      %p85 = scmp.ne.s32.totalorder %s74, %s75
      %p86 = scmp.eq.s32.totalorder %s19, 0
      %p87 = por %p85, %p86
      %p88 = scmp.ne.s32.totalorder %s74, %s75
      %p89 = scmp.eq.s32.totalorder %s20, 1
      %p90 = por %p88, %p89
      %p92 = scmp.ne.s32.totalorder %s75, %s91
      %p93 = scmp.eq.s32.totalorder %s20, 0
      %p94 = por %p92, %p93
      %p95 = scmp.le.s32.totalorder 1, %s14
      %p96 = scmp.lt.s32.totalorder %s14, 3
      %p97 = pnand %p95, %p96
      %p98 = pneg %p97
      // Predicated region
      $region9: #{tpu_custom_call.1} parent=5 // pred_check
        _
      $region10: #{tpu_custom_call.1} parent=5 // pred_check_branch
        %100 = sbr.rel (%p97) target = $region12
      $region11: #{tpu_custom_call.1} parent=5 // pred_region
        %s101 = ssub.s32 %s14, 1
        // Predicated region
        $region13: #{tpu_custom_call.1} parent=11 // pred_check
          %p102 = pneg %p35
        $region14: #{tpu_custom_call.1} parent=11 // pred_check_branch
          %104 = sbr.rel (%p102) target = $region16
        $region15: #{tpu_custom_call.1} parent=11 // pred_region
          _
        $region16: #{tpu_custom_call.1} parent=11 // pred_fallthru
          _
      $region12: #{tpu_custom_call.1} parent=5 // pred_fallthru
        _
      %p105 = scmp.lt.s32.totalorder %s14, 2
      // Predicated region
      $region17: #{tpu_custom_call.1} parent=5 // pred_check
        %p106 = pneg %p105
      $region18: #{tpu_custom_call.1} parent=5 // pred_check_branch
        %108 = sbr.rel (%p106) target = $region20
      $region19: #{tpu_custom_call.1} parent=5 // pred_region
        // Predicated region
        $region21: #{tpu_custom_call.1} parent=19 // pred_check
          %p109 = pneg %p55
        $region22: #{tpu_custom_call.1} parent=19 // pred_check_branch
          %111 = sbr.rel (%p109) target = $region24
        $region23: #{tpu_custom_call.1} parent=19 // pred_region
          %s112 = sand.u32 %s45, 1
          %s113 = scalar_lea.sflag [#allocation3], %s112
          %s114 = sand.u32 %s45, 1
          %s115 = smul.addr %s114, 32
          %s116 = scalar_lea.vmem [#allocation2], %s115
          %s117 = smul.u32 2, %s14
          %s119 = ssub.s32 512, 512
          %120 = vsyncadd %s113, %s119
          %s121 = smul.addr %s117, 64
          %s122 = scalar_lea.hbm %s1, %s121
          %s123 = sshll.u32 %s116, 4
          %s124 = int_to_ptr.vmem [resolvable:$true] %s123
          %129 = dma.hbm_to_vmem [thread:$0]  %s122, 512, %s124, %s113, 256, 128, 8
        $region24: #{tpu_custom_call.1} parent=19 // pred_fallthru
          _
      $region20: #{tpu_custom_call.1} parent=5 // pred_fallthru
        _
      %p130 = scmp.le.s32.totalorder 1, %s14
      %p131 = scmp.lt.s32.totalorder %s14, 3
      %p132 = pnand %p130, %p131
      %p133 = pneg %p132
      // Predicated region
      $region25: #{tpu_custom_call.1} parent=5 // pred_check
        _
      $region26: #{tpu_custom_call.1} parent=5 // pred_check_branch
        %135 = sbr.rel (%p132) target = $region28
      $region27: #{tpu_custom_call.1} parent=5 // pred_region
        %s136 = ssub.s32 %s14, 1
        %s137 = sand.u32 %s48, 1
        %s138 = scalar_lea.sflag [#allocation3], %s137
        %s139 = sand.u32 %s48, 1
        %s140 = smul.addr %s139, 32
        %s141 = scalar_lea.vmem [#allocation2], %s140
        // Predicated region
        $region29: #{tpu_custom_call.1} parent=27 // pred_check
          %p142 = pneg %p61
        $region30: #{tpu_custom_call.1} parent=27 // pred_check_branch
          %144 = sbr.rel (%p142) target = $region32
        $region31: #{tpu_custom_call.1} parent=27 // pred_region
          %145 = dma.done %s138, 512
        $region32: #{tpu_custom_call.1} parent=27 // pred_fallthru
          _
        %p146 = pneg %p35
        %p147 = pneg %p32
        %s148 = sand.u32 %s48, 1
        %s149 = scalar_lea.sflag [#allocation3], %s148
        %s150 = sand.u32 %s48, 1
        %s151 = smul.addr %s150, 32
        %s152 = scalar_lea.vmem [#allocation2], %s151
        %p153 = pneg %p61
        %p154 = pneg %p58
        %p155 = pneg %p87
        %p156 = pneg %p84
        %s157 = sand.u32 %s74, 1
        %s158 = scalar_lea.sflag [#allocation4], %s157
        %s159 = sand.u32 %s74, 1
        %s160 = smul.addr %s159, 128
        %s161 = scalar_lea.vmem [#allocation5], %s160
        %s162 = smul.u32 2, %s19
        %s163 = smul.u32 2, %s19
        %v165 = vld [vmem:[%s0] sm:$0xf]
        %v166 = vld [vmem:[%s0 + $0x4] sm:$0xf]
        %v167 = vld [vmem:[%s0 + $0x8] sm:$0xf]
        %v168 = vld [vmem:[%s0 + $0xc] sm:$0xf]
        %v169 = vld [vmem:[%s0 + $0x10] sm:$0xf]
        %v170 = vld [vmem:[%s0 + $0x14] sm:$0xf]
        %v171 = vld [vmem:[%s0 + $0x18] sm:$0xf]
        %v172 = vld [vmem:[%s0 + $0x1c] sm:$0xf]
        %v173 = vld [vmem:[%s141] sm:$0xff]
        %v174 = vld [vmem:[%s141 + $0x8] sm:$0xff]
        %v175 = vld [vmem:[%s141 + $0x10] sm:$0xff]
        %v176 = vld [vmem:[%s141 + $0x18] sm:$0xff]
        %v185 = vunpack.c.l.b16 %v165
        %v186 = vunpack.c.l.b16 %v166
        %v187 = vunpack.c.l.b16 %v167
        %v188 = vunpack.c.l.b16 %v168
        %v189 = vunpack.c.l.b16 %v169
        %v190 = vunpack.c.l.b16 %v170
        %v191 = vunpack.c.l.b16 %v171
        %v192 = vunpack.c.l.b16 %v172
        %v193 = vpack.c.b16 %v186, %v185
        %v194 = vpack.c.b16 %v188, %v187
        %v195 = vpack.c.b16 %v190, %v189
        %v196 = vpack.c.b16 %v192, %v191
        %v201 = vunpack.c.l.b16 %v173
        %v202 = vunpack.c.h.b16 %v173
        %v203 = vunpack.c.l.b16 %v174
        %v204 = vunpack.c.h.b16 %v174
        %v205 = vunpack.c.l.b16 %v175
        %v206 = vunpack.c.h.b16 %v175
        %v207 = vunpack.c.l.b16 %v176
        %v208 = vunpack.c.h.b16 %v176
        %v209 = vpack.c.b16 %v203, %v201
        %v210 = vpack.c.b16 %v204, %v202
        %v211 = vpack.c.b16 %v207, %v205
        %v212 = vpack.c.b16 %v208, %v206
        %vm217 = vcmask 261120
        %v219 = vsel %vm217, %v193, 0
        %v222 = vsel %vm217, %v194, 0
        %v225 = vsel %vm217, %v195, 0
        %v228 = vsel %vm217, %v196, 0
        %230 = vmatprep.subr.bf16.mxu0 %v210
        %231 = vmatpush1.bf16.msra.mxu0 %v209
        %232 = vmatprep.subr.bf16.mxu0 %v212
        %233 = vmatpush1.bf16.msra.mxu0 %v211
        %234 = vmatprep.subr.bf16.mxu0 0
        %235 = vmatpush1.bf16.msra.mxu0 0
        %236 = vmatprep.subr.bf16.mxu0 0
        %237 = vmatpush1.bf16.msra.mxu0 0
        %238 = vmatprep.subr.bf16.mxu0 0
        %239 = vmatpush1.bf16.msra.mxu0 0
        %240 = vmatprep.subr.bf16.mxu0 0
        %241 = vmatpush1.bf16.msra.mxu0 0
        %242 = vmatprep.subr.bf16.mxu0 0
        %243 = vmatpush1.bf16.msra.mxu0 0
        %244 = vmatprep.subr.bf16.mxu0 0
        %245 = vmatpush1.bf16.msra.mxu0 0
        %246 = vmatprep.subr.bf16.mxu0 0
        %247 = vmatpush1.bf16.msra.mxu0 0
        %248 = vmatprep.subr.bf16.mxu0 0
        %249 = vmatpush1.bf16.msra.mxu0 0
        %250 = vmatprep.subr.bf16.mxu0 0
        %251 = vmatpush1.bf16.msra.mxu0 0
        %252 = vmatprep.subr.bf16.mxu0 0
        %253 = vmatpush1.bf16.msra.mxu0 0
        %254 = vmatprep.subr.bf16.mxu0 0
        %255 = vmatpush1.bf16.msra.mxu0 0
        %256 = vmatprep.subr.bf16.mxu0 0
        %257 = vmatpush1.bf16.msra.mxu0 0
        %258 = vmatprep.subr.bf16.mxu0 0
        %259 = vmatpush1.bf16.msra.mxu0 0
        %260 = vmatprep.subr.bf16.mxu0 0
        %261 = vmatpush1.bf16.msra.mxu0 0
        %262 = vmatprep.mubr.bf16.mxu0 0
        %263 = vmatmul.mubr.bf16.gmra.mrb[0].mxu0 %v219
        %v264 = vpop.f32.mrb[0].mxu0
        %v265 = vadd.f32 0.0, %v264
        %v266 = vpop.f32.mrb[0].mxu0
        %v267 = vadd.f32 0.0, %v266
        %v268 = vpop.f32.mrb[0].mxu0
        %v269 = vadd.f32 0.0, %v268
        %v270 = vpop.f32.mrb[0].mxu0
        %v271 = vadd.f32 0.0, %v270
        %272 = vmatprep.mubr.bf16.mxu0 0
        %273 = vmatmul.mubr.bf16.gmra.mrb[0].mxu0 %v222
        %v274 = vpop.f32.mrb[0].mxu0
        %v275 = vadd.f32 0.0, %v274
        %v276 = vpop.f32.mrb[0].mxu0
        %v277 = vadd.f32 0.0, %v276
        %v278 = vpop.f32.mrb[0].mxu0
        %v279 = vadd.f32 0.0, %v278
        %v280 = vpop.f32.mrb[0].mxu0
        %v281 = vadd.f32 0.0, %v280
        %282 = vmatprep.mubr.bf16.mxu0 0
        %283 = vmatmul.mubr.bf16.gmra.mrb[0].mxu0 %v225
        %v284 = vpop.f32.mrb[0].mxu0
        %v285 = vadd.f32 0.0, %v284
        %v286 = vpop.f32.mrb[0].mxu0
        %v287 = vadd.f32 0.0, %v286
        %v288 = vpop.f32.mrb[0].mxu0
        %v289 = vadd.f32 0.0, %v288
        %v290 = vpop.f32.mrb[0].mxu0
        %v291 = vadd.f32 0.0, %v290
        %292 = vmatprep.mubr.bf16.mxu0 0
        %293 = vmatmul.mubr.bf16.gmra.mrb[0].mxu0 %v228
        %v294 = vpop.f32.mrb[0].mxu0
        %v295 = vadd.f32 0.0, %v294
        %v296 = vpop.f32.mrb[0].mxu0
        %v297 = vadd.f32 0.0, %v296
        %v298 = vpop.f32.mrb[0].mxu0
        %v299 = vadd.f32 0.0, %v298
        %v300 = vpop.f32.mrb[0].mxu0
        %v301 = vadd.f32 0.0, %v300
        %302 = vdwg.mxu0
        %303 = vst [vmem:[%s161] sm:$0xff] %v265
        %304 = vst [vmem:[%s161 + $0x8] sm:$0xff] %v267
        %305 = vst [vmem:[%s161 + $0x10] sm:$0xff] %v269
        %306 = vst [vmem:[%s161 + $0x18] sm:$0xff] %v271
        %307 = vst [vmem:[%s161 + $0x20] sm:$0xff] %v275
        %308 = vst [vmem:[%s161 + $0x28] sm:$0xff] %v277
        %309 = vst [vmem:[%s161 + $0x30] sm:$0xff] %v279
        %310 = vst [vmem:[%s161 + $0x38] sm:$0xff] %v281
        %311 = vst [vmem:[%s161 + $0x40] sm:$0xff] %v285
        %312 = vst [vmem:[%s161 + $0x48] sm:$0xff] %v287
        %313 = vst [vmem:[%s161 + $0x50] sm:$0xff] %v289
        %314 = vst [vmem:[%s161 + $0x58] sm:$0xff] %v291
        %315 = vst [vmem:[%s161 + $0x60] sm:$0xff] %v295
        %316 = vst [vmem:[%s161 + $0x68] sm:$0xff] %v297
        %317 = vst [vmem:[%s161 + $0x70] sm:$0xff] %v299
        %318 = vst [vmem:[%s161 + $0x78] sm:$0xff] %v301
        %s319 = sand.u32 %s74, 1
        %s320 = scalar_lea.sflag [#allocation4], %s319
        %s321 = sand.u32 %s74, 1
        %s322 = smul.addr %s321, 128
        %s323 = scalar_lea.vmem [#allocation5], %s322
        // Predicated region
        $region33: #{tpu_custom_call.1} parent=27 // pred_check
          %p324 = pneg %p84
        $region34: #{tpu_custom_call.1} parent=27 // pred_check_branch
          %326 = sbr.rel (%p324) target = $region36
        $region35: #{tpu_custom_call.1} parent=27 // pred_region
          %s327 = smul.u32 2, %s19
          %s329 = ssub.s32 2048, 2048
          %330 = vsyncadd %s320, %s329
          %s331 = smul.addr %s327, 128
          %s332 = scalar_lea.hbm %s2, %s331
          %s333 = sshll.u32 %s323, 4
          %s334 = int_to_ptr.vmem [resolvable:$true] %s333
          %339 = dma.vmem_to_hbm [thread:$0]  %s334, 2048, %s332, %s320, 256, 512, 16
        $region36: #{tpu_custom_call.1} parent=27 // pred_fallthru
          _
      $region28: #{tpu_custom_call.1} parent=5 // pred_fallthru
        _
      %p340 = scmp.le.s32.totalorder 2, %s14
      // Predicated region
      $region37: #{tpu_custom_call.1} parent=5 // pred_check
        %p341 = pneg %p340
      $region38: #{tpu_custom_call.1} parent=5 // pred_check_branch
        %343 = sbr.rel (%p341) target = $region40
      $region39: #{tpu_custom_call.1} parent=5 // pred_region
        %s344 = ssub.s32 %s14, 2
        // Predicated region
        $region41: #{tpu_custom_call.1} parent=39 // pred_check
          %p345 = pneg %p90
        $region42: #{tpu_custom_call.1} parent=39 // pred_check_branch
          %347 = sbr.rel (%p345) target = $region44
        $region43: #{tpu_custom_call.1} parent=39 // pred_region
          %s348 = sand.u32 %s75, 1
          %s349 = scalar_lea.sflag [#allocation4], %s348
          %s350 = sand.u32 %s75, 1
          %s351 = smul.addr %s350, 128
          %s352 = scalar_lea.vmem [#allocation5], %s351
          %353 = dma.done %s349, 2048
        $region44: #{tpu_custom_call.1} parent=39 // pred_fallthru
          _
      $region40: #{tpu_custom_call.1} parent=5 // pred_fallthru
        _
    $region6: #{tpu_custom_call.1} parent=1 // loop_footer
      %s18 = sadd.s32 1, %s14
    $region7: #{tpu_custom_call.1} parent=1 // loop_footer_branch
      %13 = sbr.rel target = $region3
    $region8: #{tpu_custom_call.1} parent=1 // loop_exit
      _
    %354 = vsyncpa [#allocation3], 1
    %s355 = scalar_lea.sflag [#allocation3], 1
    %356 = vsyncpa %s355, 1
    %357 = vsyncpa [#allocation4], 1
    %s358 = scalar_lea.sflag [#allocation4], 1
    %359 = vsyncpa %s358, 1

</llo_original>
